<compile_context>
chip_gen: v7x
topology: tpu7x:2x2x1
jax: 0.10.0
libtpu: 0.0.40
codegen_flags: <defaults>
</compile_context>

<pallas_src>
import functools

import jax
import jax.numpy as jnp
from jax import lax
from jax.experimental import pallas as pl
from jax.experimental.pallas import tpu as pltpu


def _contrastive_tile_kernel(o1_ref, o2_ref, lbl_ref, out_ref, *, margin, batch, tile):
    i = pl.program_id(0)

    o1 = o1_ref[...].astype(jnp.float32)           # [TB, D]
    o2 = o2_ref[...].astype(jnp.float32)           # [TB, D]
    lbl = lbl_ref[...]                             # [1, TB]  f32, lane-dense

    # Pass 1: squared row norms -> inverse norms.  F.normalize eps:
    # x / max(||x||, 1e-12) == x * rsqrt(max(||x||^2, 1e-24)).
    s1 = jnp.sum(o1 * o1, axis=1, keepdims=True)   # [TB, 1]
    s2 = jnp.sum(o2 * o2, axis=1, keepdims=True)
    inv1 = lax.rsqrt(jnp.maximum(s1, 1e-24))
    inv2 = lax.rsqrt(jnp.maximum(s2, 1e-24))

    # Pass 2: explicit normalized difference (matches F.pairwise_distance with its
    # per-element eps=1e-6; numerically faithful — no dot-product cancellation).
    diff = o1 * inv1 - o2 * inv2 + 1e-6
    d2 = jnp.sum(diff * diff, axis=1, keepdims=True)   # [TB, 1] == distance^2
    dist = jnp.sqrt(d2)
    hinge = jnp.maximum(margin - dist, 0.0)
    h2 = hinge * hinge

    # Mask rows past the real batch (last tile may overhang the array; overhang
    # data is unspecified, jnp.where fully replaces it — NaN/inf safe).
    row_valid = (i * tile + lax.broadcasted_iota(jnp.int32, (tile, 1), 0)) < batch
    d2 = jnp.where(row_valid, d2, 0.0)
    h2 = jnp.where(row_valid, h2, 0.0)

    # Labels are lane-dense [1, TB]; per-row losses are sublane vectors [TB, 1].
    # Combine + reduce with two tiny (1,TB)x(TB,1) dots on the idle MXU.
    col_valid = (i * tile + lax.broadcasted_iota(jnp.int32, (1, tile), 1)) < batch
    lbl_same = jnp.where(col_valid, lbl, 0.0)
    lbl_diff = jnp.where(col_valid, 1.0 - lbl, 0.0)
    partial = (jnp.dot(lbl_same, d2, preferred_element_type=jnp.float32) +
               jnp.dot(lbl_diff, h2, preferred_element_type=jnp.float32))[0, 0]

    # Lane-dense (8, 128) output block filled with this tile's partial sum.
    out_ref[...] = jnp.broadcast_to(partial, out_ref.shape)


def _round_up(x, m):
    return (x + m - 1) // m * m


def _vmem_capacity_bytes():
    """Generation-aware VMEM capacity; conservative 64 MiB (v7x per-TC) fallback."""
    try:
        cap = int(pltpu.get_tpu_info().vmem_capacity_bytes)
        if cap > 0:
            return cap
    except Exception:
        pass
    return 64 * 1024 * 1024


def _pick_tile(batch, feat, itemsize, vmem_cap):
    """Largest VMEM-safe row tile (multiple of 128), with >= 2 tiles when the batch
    is big enough so both v7x TensorCores get work on the "parallel" grid axis."""
    budget = int(0.42 * vmem_cap)            # ~54 MiB on v5e/v6e, ~27 MiB on v7x
    per_row = (2 * 2 * feat * itemsize       # o1 + o2, double-buffered input blocks
               + 4 * feat * 4                # allowance: materialized f32 [tb,D] temps
               + 8 * 512)                    # allowance: lane-padded [tb,1] column temps
    tb = max(128, (budget // per_row) // 128 * 128)
    b_pad = _round_up(batch, 128)
    if tb >= b_pad:
        if b_pad >= 256:                     # split so both v7x cores stream HBM
            tb = _round_up((b_pad + 1) // 2, 128)
        else:
            tb = batch                       # tiny batch: one exact full-array tile
    return tb


def contrastive_loss_adaptive_margin(output1, output2, label, *, margin=1.0):
    """output1/output2: [B, D] (f32 or bf16); label: [B] (0/1). Returns scalar loss."""
    B, D = output1.shape
    vmem_cap = _vmem_capacity_bytes()
    tb = _pick_tile(B, D, jnp.dtype(output1.dtype).itemsize, vmem_cap)
    num_tiles = pl.cdiv(B, tb)
    padded_b = num_tiles * tb

    # Labels go in lane-dense as a (1, padded_B) row (dense DMAs, correct VMEM math);
    # padding rows are zero and additionally masked in-kernel.
    lbl_row = label.astype(jnp.float32).reshape(1, B)
    if padded_b != B:
        lbl_row = jnp.pad(lbl_row, ((0, 0), (0, padded_b - B)))

    kernel = functools.partial(_contrastive_tile_kernel,
                               margin=float(margin), batch=B, tile=tb)

    partials = pl.pallas_call(
        kernel,
        out_shape=jax.ShapeDtypeStruct((num_tiles * 8, 128), jnp.float32),
        grid=(num_tiles,),
        in_specs=[
            pl.BlockSpec((tb, D), lambda i: (i, 0)),
            pl.BlockSpec((tb, D), lambda i: (i, 0)),
            pl.BlockSpec((1, tb), lambda i: (0, i)),
        ],
        out_specs=pl.BlockSpec((8, 128), lambda i: (i, 0)),
        compiler_params=pltpu.CompilerParams(
            dimension_semantics=("parallel",),       # independent tiles -> megacore OK
            vmem_limit_bytes=int(0.75 * vmem_cap)),
    )(output1, output2, lbl_row)

    # Each (8,128) block holds its tile's partial sum in every element.
    return jnp.sum(partials) / (8.0 * 128.0 * B)


def _reference(output1, output2, label, margin=1.0):
    # Pure-JAX reference replicating PyTorch semantics.
    o1 = output1.astype(jnp.float32)
    o2 = output2.astype(jnp.float32)
    o1 = o1 / jnp.maximum(jnp.linalg.norm(o1, axis=1, keepdims=True), 1e-12)
    o2 = o2 / jnp.maximum(jnp.linalg.norm(o2, axis=1, keepdims=True), 1e-12)
    dist = jnp.sqrt(jnp.sum((o1 - o2 + 1e-6) ** 2, axis=1))
    lbl = label.astype(jnp.float32)
    loss = lbl * dist ** 2 + (1.0 - lbl) * jnp.maximum(margin - dist, 0.0) ** 2
    return jnp.mean(loss)


if __name__ == "__main__":
    key = jax.random.PRNGKey(0)

    # Case 1: small aligned shape, single exact tile.
    k1, k2, k3, k4 = jax.random.split(key, 4)
    o1 = jax.random.normal(k1, (8, 128), jnp.float32)
    o2 = jax.random.normal(k2, (8, 128), jnp.float32)
    y = jax.random.bernoulli(k3, 0.5, (8,)).astype(jnp.float32)
    got = jax.block_until_ready(contrastive_loss_adaptive_margin(o1, o2, y, margin=1.0))
    want = _reference(o1, o2, y, 1.0)
    assert jnp.allclose(got, want, rtol=1e-5, atol=1e-5), (got, want)

    # Case 2: ragged batch / unaligned feature dim (full-array block, no padding needed).
    k5, k6, k7, k8 = jax.random.split(k4, 4)
    o1b = jax.random.normal(k5, (36, 96), jnp.float32)
    o2b = jax.random.normal(k6, (36, 96), jnp.float32)
    yb = jax.random.bernoulli(k7, 0.5, (36,)).astype(jnp.float32)
    got2 = jax.block_until_ready(contrastive_loss_adaptive_margin(o1b, o2b, yb, margin=1.0))
    want2 = _reference(o1b, o2b, yb, 1.0)
    assert jnp.allclose(got2, want2, rtol=1e-5, atol=1e-5), (got2, want2)

    # Case 3: multi-tile path (>= 2 tiles for v7x megacore), bf16 inputs,
    # label padding and overhang-row masking all exercised.
    k9, k10, k11 = jax.random.split(k8, 3)
    o1c = jax.random.normal(k9, (300, 64), jnp.float32).astype(jnp.bfloat16)
    o2c = jax.random.normal(k10, (300, 64), jnp.float32).astype(jnp.bfloat16)
    yc = jax.random.bernoulli(k11, 0.5, (300,)).astype(jnp.float32)
    got3 = jax.block_until_ready(contrastive_loss_adaptive_margin(o1c, o2c, yc, margin=1.0))
    want3 = _reference(o1c, o2c, yc, 1.0)
    assert jnp.allclose(got3, want3, rtol=1e-4, atol=1e-4), (got3, want3)

    print("KERNEL_OK")
</pallas_src>

<mosaic_0001>
module attributes {stable_mosaic.version = 11 : i64} {
  func.func @_contrastive_tile_kernel(%arg0: i32, %arg1: memref<8x128xf32, #tpu.memory_space<vmem>>, %arg2: memref<8x128xf32, #tpu.memory_space<vmem>>, %arg3: memref<1x8xf32, #tpu.memory_space<vmem>>, %arg4: memref<8x128xf32, #tpu.memory_space<vmem>>) attributes {dimension_semantics = [#tpu.dimension_semantics<parallel>], iteration_bounds = array<i64: 1>, scalar_prefetch = 0 : i64, scratch_operands = 0 : i64, tpu.core_type = #tpu.core_type<tc>, window_params = [{transform_indices = @transform_0, window_bounds = array<i64: 8, 128>}, {transform_indices = @transform_1, window_bounds = array<i64: 8, 128>}, {transform_indices = @transform_2, window_bounds = array<i64: 1, 8>}, {transform_indices = @transform_3, window_bounds = array<i64: 8, 128>}]} {
    %c0 = arith.constant 0 : index
    %c0_0 = arith.constant 0 : index
    %0 = vector.load %arg1[%c0, %c0_0] : memref<8x128xf32, #tpu.memory_space<vmem>>, vector<8x128xf32>
    %c0_1 = arith.constant 0 : index
    %c0_2 = arith.constant 0 : index
    %1 = vector.load %arg2[%c0_1, %c0_2] : memref<8x128xf32, #tpu.memory_space<vmem>>, vector<8x128xf32>
    %c0_3 = arith.constant 0 : index
    %c0_4 = arith.constant 0 : index
    %2 = vector.load %arg3[%c0_3, %c0_4] : memref<1x8xf32, #tpu.memory_space<vmem>>, vector<1x8xf32>
    %3 = arith.mulf %0, %0 : vector<8x128xf32>
    %cst = arith.constant dense<0.000000e+00> : vector<8xf32>
    %4 = vector.multi_reduction <add>, %3, %cst [1] : vector<8x128xf32> to vector<8xf32>
    %5 = vector.shape_cast %4 : vector<8xf32> to vector<8x1xf32>
    %6 = arith.mulf %1, %1 : vector<8x128xf32>
    %cst_5 = arith.constant dense<0.000000e+00> : vector<8xf32>
    %7 = vector.multi_reduction <add>, %6, %cst_5 [1] : vector<8x128xf32> to vector<8xf32>
    %8 = vector.shape_cast %7 : vector<8xf32> to vector<8x1xf32>
    %cst_6 = arith.constant 1.000000e-24 : f32
    %9 = vector.broadcast %cst_6 : f32 to vector<8x1xf32>
    %10 = arith.maximumf %5, %9 : vector<8x1xf32>
    %11 = math.rsqrt %10 : vector<8x1xf32>
    %cst_7 = arith.constant 1.000000e-24 : f32
    %12 = vector.broadcast %cst_7 : f32 to vector<8x1xf32>
    %13 = arith.maximumf %8, %12 : vector<8x1xf32>
    %14 = math.rsqrt %13 : vector<8x1xf32>
    %15 = vector.broadcast %11 : vector<8x1xf32> to vector<8x128xf32>
    %16 = arith.mulf %0, %15 : vector<8x128xf32>
    %17 = vector.broadcast %14 : vector<8x1xf32> to vector<8x128xf32>
    %18 = arith.mulf %1, %17 : vector<8x128xf32>
    %19 = arith.subf %16, %18 : vector<8x128xf32>
    %cst_8 = arith.constant 9.99999997E-7 : f32
    %20 = vector.broadcast %cst_8 : f32 to vector<8x128xf32>
    %21 = arith.addf %19, %20 : vector<8x128xf32>
    %22 = arith.mulf %21, %21 : vector<8x128xf32>
    %cst_9 = arith.constant dense<0.000000e+00> : vector<8xf32>
    %23 = vector.multi_reduction <add>, %22, %cst_9 [1] : vector<8x128xf32> to vector<8xf32>
    %24 = vector.shape_cast %23 : vector<8xf32> to vector<8x1xf32>
    %25 = math.sqrt %24 : vector<8x1xf32>
    %cst_10 = arith.constant 1.000000e+00 : f32
    %26 = vector.broadcast %cst_10 : f32 to vector<8x1xf32>
    %27 = arith.subf %26, %25 : vector<8x1xf32>
    %cst_11 = arith.constant 0.000000e+00 : f32
    %28 = vector.broadcast %cst_11 : f32 to vector<8x1xf32>
    %29 = arith.maximumf %27, %28 : vector<8x1xf32>
    %30 = arith.mulf %29, %29 : vector<8x1xf32>
    %c8_i32 = arith.constant 8 : i32
    %31 = arith.muli %arg0, %c8_i32 : i32
    %32 = tpu.iota {dimensions = array<i32: 0>} : vector<8x1xi32>
    %33 = vector.broadcast %31 : i32 to vector<8x1xi32>
    %34 = arith.addi %33, %32 : vector<8x1xi32>
    %c8_i32_12 = arith.constant 8 : i32
    %35 = vector.broadcast %c8_i32_12 : i32 to vector<8x1xi32>
    %36 = arith.cmpi slt, %34, %35 : vector<8x1xi32>
    %cst_13 = arith.constant 0.000000e+00 : f32
    %37 = vector.broadcast %cst_13 : f32 to vector<8x1xf32>
    %38 = arith.select %36, %24, %37 : vector<8x1xi1>, vector<8x1xf32>
    %cst_14 = arith.constant 0.000000e+00 : f32
    %39 = vector.broadcast %cst_14 : f32 to vector<8x1xf32>
    %40 = arith.select %36, %30, %39 : vector<8x1xi1>, vector<8x1xf32>
    %c8_i32_15 = arith.constant 8 : i32
    %41 = arith.muli %arg0, %c8_i32_15 : i32
    %42 = tpu.iota {dimensions = array<i32: 1>} : vector<1x8xi32>
    %43 = vector.broadcast %41 : i32 to vector<1x8xi32>
    %44 = arith.addi %43, %42 : vector<1x8xi32>
    %c8_i32_16 = arith.constant 8 : i32
    %45 = vector.broadcast %c8_i32_16 : i32 to vector<1x8xi32>
    %46 = arith.cmpi slt, %44, %45 : vector<1x8xi32>
    %cst_17 = arith.constant 0.000000e+00 : f32
    %47 = vector.broadcast %cst_17 : f32 to vector<1x8xf32>
    %48 = arith.select %46, %2, %47 : vector<1x8xi1>, vector<1x8xf32>
    %cst_18 = arith.constant 1.000000e+00 : f32
    %49 = vector.broadcast %cst_18 : f32 to vector<1x8xf32>
    %50 = arith.subf %49, %2 : vector<1x8xf32>
    %cst_19 = arith.constant 0.000000e+00 : f32
    %51 = vector.broadcast %cst_19 : f32 to vector<1x8xf32>
    %52 = arith.select %46, %50, %51 : vector<1x8xi1>, vector<1x8xf32>
    %cst_20 = arith.constant dense<0.000000e+00> : vector<1x1xf32>
    %53 = tpu.matmul %48, %38, %cst_20 {dimension_numbers = #tpu.dot_dimension_numbers<[1], [0], [0], [1], [0, 0, 1, 1], [], []>} : vector<1x8xf32>, vector<8x1xf32>, vector<1x1xf32> -> vector<1x1xf32>
    %cst_21 = arith.constant dense<0.000000e+00> : vector<1x1xf32>
    %54 = tpu.matmul %52, %40, %cst_21 {dimension_numbers = #tpu.dot_dimension_numbers<[1], [0], [0], [1], [0, 0, 1, 1], [], []>} : vector<1x8xf32>, vector<8x1xf32>, vector<1x1xf32> -> vector<1x1xf32>
    %55 = arith.addf %53, %54 : vector<1x1xf32>
    %56 = vector.extract %55[0, 0] : f32 from vector<1x1xf32>
    %57 = vector.broadcast %56 : f32 to vector<8x128xf32>
    %c0_22 = arith.constant 0 : index
    %c0_23 = arith.constant 0 : index
    %58 = vector.load %arg4[%c0_22, %c0_23] : memref<8x128xf32, #tpu.memory_space<vmem>>, vector<8x128xf32>
    tpu.vector_store %arg4[%c0_22, %c0_23], %57 {strides = array<i32>} : memref<8x128xf32, #tpu.memory_space<vmem>>, vector<8x128xf32>,
    return
  }
  func.func @transform_0(%arg0: i32) -> (i32, i32) {
    %c0_i32 = arith.constant 0 : i32
    %c0_i32_0 = arith.constant 0 : i32
    return %arg0, %c0_i32 : i32, i32
  }
  func.func @transform_1(%arg0: i32) -> (i32, i32) {
    %c0_i32 = arith.constant 0 : i32
    %c0_i32_0 = arith.constant 0 : i32
    return %arg0, %c0_i32 : i32, i32
  }
  func.func @transform_2(%arg0: i32) -> (i32, i32) {
    %c0_i32 = arith.constant 0 : i32
    %c0_i32_0 = arith.constant 0 : i32
    return %c0_i32, %arg0 : i32, i32
  }
  func.func @transform_3(%arg0: i32) -> (i32, i32) {
    %c0_i32 = arith.constant 0 : i32
    %c0_i32_0 = arith.constant 0 : i32
    return %arg0, %c0_i32 : i32, i32
  }
}

</mosaic_0001>

<llo_original>
// kernel: tpu_custom_call.1
$region0: #{tpu_custom_call.1}
  #allocation0 [shape = 'u32[]', space=smem, size = 0x4, offset = 0x4, fixed_abs, tag = 'smem constant byte address 0x4 - core index']
  #allocation1 [shape = 'u32[144,128]{1,0:T(1,128)}', space=vmem, size = 0x12000, scoped, tag = 'internal scratch']
  %s0 = inlined_call_operand.hbm [shape: f32[8,128], index: 0, kind: input, shape index: {}]
  %s1 = inlined_call_operand.hbm [shape: f32[8,128], index: 1, kind: input, shape index: {}]
  %s2 = inlined_call_operand.vmem [shape: f32[1,8], index: 2, kind: input, shape index: {}]
  %s3 = inlined_call_operand.hbm [shape: f32[8,128], index: 3, kind: output, shape index: {}]
  %s4 = sld [smem:[#allocation0]]
  $region30: #{tpu_custom_call.1} parent=0
    _
  %s6 = ssub.s32 1, %s4
  %s7 = scalar_select 0, %s6, %s4
  $region1: #{tpu_custom_call.1} parent=0
    #allocation2 [shape = 'u8[4096]{0}', space=vmem, size = 0x1000, scoped, tag = 'input window, operand 0, single buffered']
    #allocation3 [shape = 's32[1]{0}', space=sflag, size = 0x4, scoped, tag = 'scoped memory for tpu_custom_call.1']
    #allocation4 [shape = 's32[1]{0}', space=sflag, size = 0x4, scoped, tag = 'scoped memory for tpu_custom_call.1']
    #allocation5 [shape = 'u8[4096]{0}', space=vmem, size = 0x1000, scoped, tag = 'input window, operand 1, single buffered']
    #allocation6 [shape = 's32[1]{0}', space=sflag, size = 0x4, scoped, tag = 'scoped memory for tpu_custom_call.1']
    #allocation7 [shape = 'u8[4096]{0}', space=vmem, size = 0x1000, scoped, tag = 'output window, operand 0, single buffered']
    %8 = vsyncpa [#allocation3], 0
    %9 = vsyncpa [#allocation6], 0
    %10 = vsyncpa [#allocation4], 0
    // Predicated region
    $region2: #{tpu_custom_call.1} parent=1 // pred_check
      _
    $region3: #{tpu_custom_call.1} parent=1 // pred_check_branch
      %12 = sbr.rel (0) target = $region5
    $region4: #{tpu_custom_call.1} parent=1 // pred_region
      %s14 = ssub.s32 128, 128
      %15 = vsyncadd [#allocation3], %s14
      %s17 = sshll.u32 [#allocation2], 4
      %s18 = int_to_ptr.vmem [resolvable:$true] %s17
      %20 = dma.hbm_to_vmem [thread:$0]  %s0, 128, %s18, [#allocation3]
    $region5: #{tpu_custom_call.1} parent=1 // pred_fallthru
      _
    // Predicated region
    $region6: #{tpu_custom_call.1} parent=1 // pred_check
      _
    $region7: #{tpu_custom_call.1} parent=1 // pred_check_branch
      %22 = sbr.rel (0) target = $region9
    $region8: #{tpu_custom_call.1} parent=1 // pred_region
      %s24 = ssub.s32 128, 128
      %25 = vsyncadd [#allocation6], %s24
      %s27 = sshll.u32 [#allocation5], 4
      %s28 = int_to_ptr.vmem [resolvable:$true] %s27
      %30 = dma.hbm_to_vmem [thread:$0]  %s1, 128, %s28, [#allocation6]
    $region9: #{tpu_custom_call.1} parent=1 // pred_fallthru
      _
    // Predicated region
    $region10: #{tpu_custom_call.1} parent=1 // pred_check
      _
    $region11: #{tpu_custom_call.1} parent=1 // pred_check_branch
      %32 = sbr.rel (0) target = $region13
    $region12: #{tpu_custom_call.1} parent=1 // pred_region
      _
    $region13: #{tpu_custom_call.1} parent=1 // pred_fallthru
      _
    // Predicated region
    $region14: #{tpu_custom_call.1} parent=1 // pred_check
      _
    $region15: #{tpu_custom_call.1} parent=1 // pred_check_branch
      %34 = sbr.rel (0) target = $region17
    $region16: #{tpu_custom_call.1} parent=1 // pred_region
      %35 = dma.done [#allocation3], 128
    $region17: #{tpu_custom_call.1} parent=1 // pred_fallthru
      _
    // Predicated region
    $region18: #{tpu_custom_call.1} parent=1 // pred_check
      _
    $region19: #{tpu_custom_call.1} parent=1 // pred_check_branch
      %37 = sbr.rel (0) target = $region21
    $region20: #{tpu_custom_call.1} parent=1 // pred_region
      %38 = dma.done [#allocation6], 128
    $region21: #{tpu_custom_call.1} parent=1 // pred_fallthru
      _
    %v39 = vld [vmem:[#allocation2] sm:$0xff]
    %v40 = vld [vmem:[#allocation5] sm:$0xff]
    %v41 = vld [vmem:[%s2] sm:$0x1]
    %v42 = vmul.f32 %v39, %v39
    %43 = vadd.xlane.f32.xlu0 %v42
    %v44 = vpop.xlane.xlu0 %43
    %v45 = vmul.f32 %v40, %v40
    %46 = vadd.xlane.f32.xlu0 %v45
    %v47 = vpop.xlane.xlu0 %46
    %v48 = vmax.f32 %v44, 1e-24
    %v49 = vrsqrt.pop %v48
    %v50 = vmax.f32 %v47, 1e-24
    %v51 = vrsqrt.pop %v50
    %v52 = vmul.f32 %v39, %v49
    %v53 = vmul.f32 %v40, %v51
    %v54 = vsub.f32 %v52, %v53
    %v55 = vadd.f32 %v54, 1e-06
    %v56 = vmul.f32 %v55, %v55
    %57 = vadd.xlane.f32.xlu0 %v56
    %v58 = vpop.xlane.xlu0 %57
    %v59 = vrsqrt.pop %v58
    %v60 = vmul.f32 %v58, %v59
    %vm61 = vcmp.eq.f32.partialorder %v58, inf
    %v62 = vsel %vm61, %v58, %v60
    %vm63 = vcmp.eq.f32.partialorder %v58, 0.0
    %v64 = vand.u32 %v58, 2147483648
    %v65 = vsel %vm63, %v64, %v62
    %v66 = vsub.f32 1.0, %v65
    %v67 = vmax.f32 %v66, 0.0
    %v68 = vmul.f32 %v67, %v67
    %s69 = smul.u32 0, 8
    %v70 = vlaneseq
    %v71 = vshrl.u32 %v70, 7
    %v72 = vstv %s69
    %v73 = vadd.s32 %v72, %v71
    %vm74 = vcmp.lt.s32.totalorder %v73, 8
    %v75 = vsel %vm74, %v58, 0.0
    %v76 = vsel %vm74, %v68, 0.0
    %v77 = vlaneseq
    %v78 = vand.u32 %v77, 127
    %v79 = vadd.s32 %v72, %v78
    %vm80 = vcmp.lt.s32.totalorder %v79, 8
    %v81 = vsel %vm80, %v41, 0.0
    %v82 = vsub.f32 1.0, %v41
    %v83 = vsel %vm80, %v82, 0.0
    %vm84 = vcmask 64512
    %v86 = vsel %vm84, %v83, 0
    %88 = vmatprep.subr.mxu0 0.0
    %89 = vmatpush1.msra.mxu0 %v76
    %90 = vmatprep.subr.mxu0 0.0
    %91 = vmatpush1.msra.mxu0 0.0
    %92 = vmatprep.subr.mxu0 0.0
    %93 = vmatpush1.msra.mxu0 0.0
    %94 = vmatprep.subr.mxu0 0.0
    %95 = vmatpush1.msra.mxu0 0.0
    %96 = vmatprep.subr.mxu0 0.0
    %97 = vmatpush1.msra.mxu0 0.0
    %98 = vmatprep.subr.mxu0 0.0
    %99 = vmatpush1.msra.mxu0 0.0
    %100 = vmatprep.subr.mxu0 0.0
    %101 = vmatpush1.msra.mxu0 0.0
    %102 = vmatprep.subr.mxu0 0.0
    %103 = vmatpush1.msra.mxu0 0.0
    %104 = vmatprep.subr.mxu0 0.0
    %105 = vmatpush1.msra.mxu0 0.0
    %106 = vmatprep.subr.mxu0 0.0
    %107 = vmatpush1.msra.mxu0 0.0
    %108 = vmatprep.subr.mxu0 0.0
    %109 = vmatpush1.msra.mxu0 0.0
    %110 = vmatprep.subr.mxu0 0.0
    %111 = vmatpush1.msra.mxu0 0.0
    %112 = vmatprep.subr.mxu0 0.0
    %113 = vmatpush1.msra.mxu0 0.0
    %114 = vmatprep.subr.mxu0 0.0
    %115 = vmatpush1.msra.mxu0 0.0
    %116 = vmatprep.subr.mxu0 0.0
    %117 = vmatpush1.msra.mxu0 0.0
    %118 = vmatprep.subr.mxu0 0.0
    %119 = vmatpush1.msra.mxu0 0.0
    %120 = vmatprep.subr.mxu0 0.0
    %121 = vmatpush1.msra.mxu0 0.0
    %122 = vmatprep.subr.mxu0 0.0
    %123 = vmatpush1.msra.mxu0 0.0
    %124 = vmatprep.subr.mxu0 0.0
    %125 = vmatpush1.msra.mxu0 0.0
    %126 = vmatprep.subr.mxu0 0.0
    %127 = vmatpush1.msra.mxu0 0.0
    %128 = vmatprep.subr.mxu0 0.0
    %129 = vmatpush1.msra.mxu0 0.0
    %130 = vmatprep.subr.mxu0 0.0
    %131 = vmatpush1.msra.mxu0 0.0
    %132 = vmatprep.subr.mxu0 0.0
    %133 = vmatpush1.msra.mxu0 0.0
    %134 = vmatprep.subr.mxu0 0.0
    %135 = vmatpush1.msra.mxu0 0.0
    %136 = vmatprep.subr.mxu0 0.0
    %137 = vmatpush1.msra.mxu0 0.0
    %138 = vmatprep.subr.mxu0 0.0
    %139 = vmatpush1.msra.mxu0 0.0
    %140 = vmatprep.subr.mxu0 0.0
    %141 = vmatpush1.msra.mxu0 0.0
    %142 = vmatprep.subr.mxu0 0.0
    %143 = vmatpush1.msra.mxu0 0.0
    %144 = vmatprep.subr.mxu0 0.0
    %145 = vmatpush1.msra.mxu0 0.0
    %146 = vmatprep.subr.mxu0 0.0
    %147 = vmatpush1.msra.mxu0 0.0
    %148 = vmatprep.subr.mxu0 0.0
    %149 = vmatpush1.msra.mxu0 0.0
    %150 = vmatprep.subr.mxu0 0.0
    %151 = vmatpush1.msra.mxu0 0.0
    %152 = vmatprep.mubr.f32.mxu0 0.0
    %153 = vmatmul.mubr.f32.gmra.mrb[0].mxu0 %v86
    %v154 = vpop.f32.mrb[0].mxu0
    %v155 = vadd.f32 0.0, %v154
    %v156 = vpop.f32.mrb[0].mxu0
    %157 = vdwg.mxu0
    %v159 = vsel %vm84, %v81, 0
    %161 = vmatprep.subr.mxu0 0.0
    %162 = vmatpush1.msra.mxu0 %v75
    %163 = vmatprep.subr.mxu0 0.0
    %164 = vmatpush1.msra.mxu0 0.0
    %165 = vmatprep.subr.mxu0 0.0
    %166 = vmatpush1.msra.mxu0 0.0
    %167 = vmatprep.subr.mxu0 0.0
    %168 = vmatpush1.msra.mxu0 0.0
    %169 = vmatprep.subr.mxu0 0.0
    %170 = vmatpush1.msra.mxu0 0.0
    %171 = vmatprep.subr.mxu0 0.0
    %172 = vmatpush1.msra.mxu0 0.0
    %173 = vmatprep.subr.mxu0 0.0
    %174 = vmatpush1.msra.mxu0 0.0
    %175 = vmatprep.subr.mxu0 0.0
    %176 = vmatpush1.msra.mxu0 0.0
    %177 = vmatprep.subr.mxu0 0.0
    %178 = vmatpush1.msra.mxu0 0.0
    %179 = vmatprep.subr.mxu0 0.0
    %180 = vmatpush1.msra.mxu0 0.0
    %181 = vmatprep.subr.mxu0 0.0
    %182 = vmatpush1.msra.mxu0 0.0
    %183 = vmatprep.subr.mxu0 0.0
    %184 = vmatpush1.msra.mxu0 0.0
    %185 = vmatprep.subr.mxu0 0.0
    %186 = vmatpush1.msra.mxu0 0.0
    %187 = vmatprep.subr.mxu0 0.0
    %188 = vmatpush1.msra.mxu0 0.0
    %189 = vmatprep.subr.mxu0 0.0
    %190 = vmatpush1.msra.mxu0 0.0
    %191 = vmatprep.subr.mxu0 0.0
    %192 = vmatpush1.msra.mxu0 0.0
    %193 = vmatprep.subr.mxu0 0.0
    %194 = vmatpush1.msra.mxu0 0.0
    %195 = vmatprep.subr.mxu0 0.0
    %196 = vmatpush1.msra.mxu0 0.0
    %197 = vmatprep.subr.mxu0 0.0
    %198 = vmatpush1.msra.mxu0 0.0
    %199 = vmatprep.subr.mxu0 0.0
    %200 = vmatpush1.msra.mxu0 0.0
    %201 = vmatprep.subr.mxu0 0.0
    %202 = vmatpush1.msra.mxu0 0.0
    %203 = vmatprep.subr.mxu0 0.0
    %204 = vmatpush1.msra.mxu0 0.0
    %205 = vmatprep.subr.mxu0 0.0
    %206 = vmatpush1.msra.mxu0 0.0
    %207 = vmatprep.subr.mxu0 0.0
    %208 = vmatpush1.msra.mxu0 0.0
    %209 = vmatprep.subr.mxu0 0.0
    %210 = vmatpush1.msra.mxu0 0.0
    %211 = vmatprep.subr.mxu0 0.0
    %212 = vmatpush1.msra.mxu0 0.0
    %213 = vmatprep.subr.mxu0 0.0
    %214 = vmatpush1.msra.mxu0 0.0
    %215 = vmatprep.subr.mxu0 0.0
    %216 = vmatpush1.msra.mxu0 0.0
    %217 = vmatprep.subr.mxu0 0.0
    %218 = vmatpush1.msra.mxu0 0.0
    %219 = vmatprep.subr.mxu0 0.0
    %220 = vmatpush1.msra.mxu0 0.0
    %221 = vmatprep.subr.mxu0 0.0
    %222 = vmatpush1.msra.mxu0 0.0
    %223 = vmatprep.subr.mxu0 0.0
    %224 = vmatpush1.msra.mxu0 0.0
    %225 = vmatprep.mubr.f32.mxu0 0.0
    %226 = vmatmul.mubr.f32.gmra.mrb[0].mxu0 %v159
    %v227 = vpop.f32.mrb[0].mxu0
    %v228 = vadd.f32 %v155, %v227
    %v229 = vpop.f32.mrb[0].mxu0
    %230 = vdwg.mxu0
    %s231 = vtos %v228
    %v232 = vstv %s231
    %233 = vst [vmem:[#allocation7] sm:$0xff] %v232
    // Predicated region
    $region22: #{tpu_custom_call.1} parent=1 // pred_check
      _
    $region23: #{tpu_custom_call.1} parent=1 // pred_check_branch
      %235 = sbr.rel (0) target = $region25
    $region24: #{tpu_custom_call.1} parent=1 // pred_region
      %s237 = ssub.s32 128, 128
      %238 = vsyncadd [#allocation4], %s237
      %s240 = sshll.u32 [#allocation7], 4
      %s241 = int_to_ptr.vmem [resolvable:$true] %s240
      %243 = dma.vmem_to_hbm [thread:$0]  %s241, 128, %s3, [#allocation4]
    $region25: #{tpu_custom_call.1} parent=1 // pred_fallthru
      _
    // Predicated region
    $region26: #{tpu_custom_call.1} parent=1 // pred_check
      _
    $region27: #{tpu_custom_call.1} parent=1 // pred_check_branch
      %245 = sbr.rel (0) target = $region29
    $region28: #{tpu_custom_call.1} parent=1 // pred_region
      %246 = dma.done [#allocation4], 128
    $region29: #{tpu_custom_call.1} parent=1 // pred_fallthru
      _
    %247 = vsyncpa [#allocation3], 1
    %248 = vsyncpa [#allocation6], 1
    %249 = vsyncpa [#allocation4], 1

</llo_original>
